<compile_context>
chip_gen: v7x
topology: tpu7x:2x2x1
jax: 0.10.0
libtpu: 0.0.40
codegen_flags: <defaults>
</compile_context>

<pallas_src>
import functools

import jax
import jax.numpy as jnp
from jax.experimental import pallas as pl
from jax.experimental.pallas import tpu as pltpu


def _round_up(x: int, m: int) -> int:
    return (x + m - 1) // m * m


def _cdiv(a: int, b: int) -> int:
    return (a + b - 1) // b


_LANE = 128
_MXU = 256
_VMEM_TILE_BUDGET = 40 * 1024 * 1024   # headroom inside v7x's 64 MiB VMEM
_VMEM_LIMIT_CAP = 64 * 1024 * 1024     # never ask for more than v7x physical
_W1_RESIDENT_LIMIT = 16 * 1024 * 1024  # above this, K-tile layer 1 instead


def _feat_pad(d: int) -> int:
    # <=128 -> 128 (lane width, native for v5e's 128x128 MXU).
    # >128  -> 256-aligned so each MXU pass fills the 256x256 array on v6e/v7x.
    return _LANE if d <= _LANE else _round_up(d, _MXU)


def _mlp_kernel(x_ref, w1_ref, b1_ref, w2_ref, b2_ref, w3_ref, b3_ref,
                *outs_and_scratch, norm: bool, compute_dtype):
    """One (batch tile, K tile) step of the 3-layer MLP (+ optional L2 norm).

    Grid = (batch tiles, K tiles over y_dim). Layer-1 partial products are
    accumulated in an f32 VMEM scratch; layers 2/3, bias/ReLU and the optional
    normalization run only on the last K step. Matmul operands are bf16 for
    MXU throughput; accumulation and elementwise math stay f32.
    """
    acc_ref = outs_and_scratch[-1]
    out_refs = outs_and_scratch[:-1]
    k = pl.program_id(1)

    @pl.when(k == 0)
    def _init():
        acc_ref[...] = jnp.zeros_like(acc_ref)

    # In-kernel cast of the streamed operand (VPU work hidden under the matmul;
    # avoids a separate wrapper-side HBM read+write pass over x).
    x = x_ref[...].astype(compute_dtype)
    acc_ref[...] += jnp.dot(x, w1_ref[...], preferred_element_type=jnp.float32)

    @pl.when(k == pl.num_programs(1) - 1)
    def _finalize():
        # Layer 1 bias + ReLU
        h = jnp.maximum(acc_ref[...] + b1_ref[...], 0.0)
        # Layer 2: Linear + ReLU
        h = jnp.dot(h.astype(compute_dtype), w2_ref[...],
                    preferred_element_type=jnp.float32) + b2_ref[...]
        h = jnp.maximum(h, 0.0)
        # Layer 3: Linear (hash-code head)
        o = jnp.dot(h.astype(compute_dtype), w3_ref[...],
                    preferred_element_type=jnp.float32) + b3_ref[...]

        out_refs[0][...] = o.astype(out_refs[0].dtype)
        if norm:
            # torch.norm(out, dim=1, keepdim=True); out / norm.
            # Padded output columns are exactly zero -> they don't affect the sum.
            sq = jnp.sum(o * o, axis=-1, keepdims=True)
            out_refs[1][...] = (o * jax.lax.rsqrt(sq)).astype(out_refs[1].dtype)


@functools.partial(jax.jit, static_argnames=("norm", "compute_dtype", "block_batch"))
def image_net_forward(x, params, *, norm: bool = False,
                      compute_dtype=jnp.bfloat16, block_batch: int = 1024):
    """params = dict with w1,b1,w2,b2,w3,b3; weights stored as (in, out)."""
    w1, b1 = params["w1"], params["b1"]
    w2, b2 = params["w2"], params["b2"]
    w3, b3 = params["w3"], params["b3"]

    B, y_dim = x.shape
    h1, h2, bit = w1.shape[1], w2.shape[1], w3.shape[1]
    n_out = 2 if norm else 1

    Yp, H1p, H2p, BITp = (_feat_pad(d) for d in (y_dim, h1, h2, bit))
    wdt = jnp.dtype(compute_dtype).itemsize

    # ---- Layer-1 K tiling: keep W1 fully resident when it is small enough,
    # otherwise stream (TK, H1p) slices along a second "arbitrary" grid axis.
    if Yp * H1p * wdt <= _W1_RESIDENT_LIMIT:
        TK = Yp
    else:
        TK = _LANE
        for cand in range(_LANE, Yp, _LANE):
            if Yp % cand == 0 and 2 * cand * H1p * wdt <= _W1_RESIDENT_LIMIT:
                TK = cand
    n_k = Yp // TK

    # ---- VMEM budgeting for the batch tile TM.
    def vmem_estimate(tm: int) -> int:
        weights = ((2 if n_k > 1 else 1) * TK * H1p * wdt   # w1 block(s)
                   + H1p * H2p * wdt + H2p * BITp * wdt      # w2, w3 (1 buffer)
                   + (H1p + H2p + BITp) * 4)                  # biases (f32)
        per_row = (2 * TK * 4                   # x tile (f32, double-buffered)
                   + n_out * 2 * BITp * 4       # output tile(s), double-buffered
                   + H1p * 4                    # layer-1 f32 accumulator scratch
                   + (H1p + H2p) * 6 + BITp * 4)  # f32 temps + bf16 recasts
        return weights + tm * per_row

    tm_cap = max(16, block_batch)
    while tm_cap > 16 and vmem_estimate(tm_cap) > _VMEM_TILE_BUDGET:
        tm_cap //= 2
    tm_cap = max(16, tm_cap)

    # Balanced tiles (no mostly-padding last tile); prefer an even tile count
    # so the "parallel" batch axis actually splits across v7x's 2 TensorCores.
    n_tiles = max(1, _cdiv(B, tm_cap))
    if n_tiles > 1 and n_tiles % 2 == 1:
        n_tiles += 1
    TM = _round_up(_cdiv(B, n_tiles), 16)
    Bp = n_tiles * TM

    # ---- Operand preparation. x stays f32 (cast happens inside the kernel);
    # padding is skipped entirely when shapes already line up.
    x = x.astype(jnp.float32)
    xp = x if (Bp, Yp) == (B, y_dim) else jnp.pad(
        x, ((0, Bp - B), (0, Yp - y_dim)))

    def pad2(a, rows, cols, dtype):
        a = a.astype(dtype)
        pr, pc = rows - a.shape[0], cols - a.shape[1]
        return jnp.pad(a, ((0, pr), (0, pc))) if (pr or pc) else a

    w1p = pad2(w1, Yp, H1p, compute_dtype)
    w2p = pad2(w2, H1p, H2p, compute_dtype)
    w3p = pad2(w3, H2p, BITp, compute_dtype)
    # Biases stay f32 (added to the f32 accumulator).
    b1p = pad2(b1.reshape(1, -1), 1, H1p, jnp.float32)
    b2p = pad2(b2.reshape(1, -1), 1, H2p, jnp.float32)
    b3p = pad2(b3.reshape(1, -1), 1, BITp, jnp.float32)

    # ---- BlockSpecs.
    def resident(shape):
        # Constant index_map -> fetched once; single buffer (no wasted 2x VMEM).
        return pl.BlockSpec(shape, lambda i, k: (0,) * len(shape),
                            pipeline_mode=pl.Buffered(1))

    if n_k == 1:
        w1_spec = resident(w1p.shape)
    else:
        w1_spec = pl.BlockSpec((TK, H1p), lambda i, k: (k, 0))  # streamed over K

    x_spec = pl.BlockSpec((TM, TK), lambda i, k: (i, k))
    out_spec = pl.BlockSpec((TM, BITp), lambda i, k: (i, 0))

    in_specs = [
        x_spec,
        w1_spec, resident(b1p.shape),
        resident(w2p.shape), resident(b2p.shape),
        resident(w3p.shape), resident(b3p.shape),
    ]
    out_shape = tuple(jax.ShapeDtypeStruct((Bp, BITp), jnp.float32)
                      for _ in range(n_out))
    out_specs = tuple(out_spec for _ in range(n_out))

    flops = 2 * Bp * (Yp * H1p + H1p * H2p + H2p * BITp)
    bytes_accessed = (
        xp.size * 4
        + sum(a.size * a.dtype.itemsize
              for a in (w1p, w2p, w3p, b1p, b2p, b3p))
        + n_out * Bp * BITp * 4)
    cost = pl.CostEstimate(flops=flops,
                           transcendentals=Bp if norm else 0,
                           bytes_accessed=bytes_accessed)

    # Explicit scoped-VMEM limit: lifts v5e's 16 MiB default, stays within
    # v7x's 64 MiB physical.
    vmem_limit = int(min(_VMEM_LIMIT_CAP,
                         max(32 * 1024 * 1024,
                             int(vmem_estimate(TM) * 1.5) + (2 << 20))))

    outs = pl.pallas_call(
        functools.partial(_mlp_kernel, norm=norm, compute_dtype=compute_dtype),
        out_shape=out_shape,
        grid=(n_tiles, n_k),
        in_specs=in_specs,
        out_specs=out_specs,
        scratch_shapes=[pltpu.VMEM((TM, H1p), jnp.float32)],
        compiler_params=pltpu.CompilerParams(
            dimension_semantics=("parallel", "arbitrary"),
            vmem_limit_bytes=vmem_limit),
        cost_estimate=cost,
    )(xp, w1p, b1p, w2p, b2p, w3p, b3p)

    out1 = outs[0][:B, :bit]
    out = outs[1][:B, :bit] if norm else out1
    return out1, out


def init_params(key, y_dim, hid_num, bit, dtype=jnp.float32):
    """Deterministic init mimicking nn.Linear's uniform(-1/sqrt(fan_in), +)."""
    dims = [y_dim] + list(hid_num) + [bit]
    params = {}
    for i in range(len(dims) - 1):
        fan_in, fan_out = dims[i], dims[i + 1]
        key, kw, kb = jax.random.split(key, 3)
        bound = 1.0 / float(fan_in) ** 0.5
        # stored as (in, out): kernel computes x @ W + b
        params[f"w{i+1}"] = jax.random.uniform(
            kw, (fan_in, fan_out), dtype, minval=-bound, maxval=bound)
        params[f"b{i+1}"] = jax.random.uniform(
            kb, (1, fan_out), dtype, minval=-bound, maxval=bound)
    return params


def _reference_forward(x, params, norm, compute_dtype=jnp.bfloat16):
    """Pure-JAX reference mirroring the kernel's precision choices."""
    cd = compute_dtype
    h = jnp.maximum(jnp.dot(x.astype(cd), params["w1"].astype(cd),
                            preferred_element_type=jnp.float32) + params["b1"], 0.0)
    h = jnp.maximum(jnp.dot(h.astype(cd), params["w2"].astype(cd),
                            preferred_element_type=jnp.float32) + params["b2"], 0.0)
    o = jnp.dot(h.astype(cd), params["w3"].astype(cd),
                preferred_element_type=jnp.float32) + params["b3"]
    if norm:
        n = jnp.sqrt(jnp.sum(o * o, axis=1, keepdims=True))
        return o, o / n
    return o, o


if __name__ == "__main__":
    # Small shapes consistent with the module: y_dim tags -> hidden -> bit code.
    batch, y_dim, bit = 8, 32, 16
    hid_num = [64, 64]

    key = jax.random.PRNGKey(0)
    key, kx = jax.random.split(key)
    x = jax.random.normal(kx, (batch, y_dim), jnp.float32)
    params = init_params(key, y_dim, hid_num, bit)

    # norm=True branch of forward()
    out1, out = image_net_forward(x, params, norm=True)
    jax.block_until_ready((out1, out))
    ref1, ref = _reference_forward(x, params, True)
    assert out1.shape == (batch, bit) and out.shape == (batch, bit)
    assert jnp.allclose(out1, ref1, atol=2e-3, rtol=2e-3), "out1 mismatch"
    assert jnp.allclose(out, ref, atol=2e-3, rtol=2e-3), "normalized out mismatch"

    # norm=False (single-output writeback) branch
    o1, o = image_net_forward(x, params, norm=False)
    jax.block_until_ready((o1, o))
    r1, _ = _reference_forward(x, params, False)
    assert jnp.allclose(o1, r1, atol=2e-3, rtol=2e-3)

    print("KERNEL_OK")
</pallas_src>

<mosaic_0001>
module attributes {stable_mosaic.version = 11 : i64} {
  func.func @_mlp_kernel(%arg0: i32, %arg1: i32, %arg2: memref<16x128xf32, #tpu.memory_space<vmem>>, %arg3: memref<128x128xbf16, #tpu.memory_space<vmem>>, %arg4: memref<1x128xf32, #tpu.memory_space<vmem>>, %arg5: memref<128x128xbf16, #tpu.memory_space<vmem>>, %arg6: memref<1x128xf32, #tpu.memory_space<vmem>>, %arg7: memref<128x128xbf16, #tpu.memory_space<vmem>>, %arg8: memref<1x128xf32, #tpu.memory_space<vmem>>, %arg9: memref<16x128xf32, #tpu.memory_space<vmem>>, %arg10: memref<16x128xf32, #tpu.memory_space<vmem>>, %arg11: memref<16x128xf32, #tpu.memory_space<vmem>>) attributes {dimension_semantics = [#tpu.dimension_semantics<parallel>, #tpu.dimension_semantics<arbitrary>], iteration_bounds = array<i64: 1, 1>, scalar_prefetch = 0 : i64, scratch_operands = 1 : i64, tpu.core_type = #tpu.core_type<tc>, window_params = [{transform_indices = @transform_0, window_bounds = array<i64: 16, 128>}, {pipeline_mode = #tpu.pipeline_mode<synchronous>, transform_indices = @transform_1, window_bounds = array<i64: 128, 128>}, {pipeline_mode = #tpu.pipeline_mode<synchronous>, transform_indices = @transform_2, window_bounds = array<i64: 1, 128>}, {pipeline_mode = #tpu.pipeline_mode<synchronous>, transform_indices = @transform_3, window_bounds = array<i64: 128, 128>}, {pipeline_mode = #tpu.pipeline_mode<synchronous>, transform_indices = @transform_4, window_bounds = array<i64: 1, 128>}, {pipeline_mode = #tpu.pipeline_mode<synchronous>, transform_indices = @transform_5, window_bounds = array<i64: 128, 128>}, {pipeline_mode = #tpu.pipeline_mode<synchronous>, transform_indices = @transform_6, window_bounds = array<i64: 1, 128>}, {transform_indices = @transform_7, window_bounds = array<i64: 16, 128>}, {transform_indices = @transform_8, window_bounds = array<i64: 16, 128>}]} {
    %c0_i32 = arith.constant 0 : i32
    %0 = arith.cmpi eq, %arg1, %c0_i32 : i32
    %1 = arith.extui %0 : i1 to i32
    %c0_i32_0 = arith.constant 0 : i32
    %2 = arith.cmpi ne, %1, %c0_i32_0 : i32
    scf.if %2 {
      %cst_10 = arith.constant 0.000000e+00 : f32
      %13 = vector.broadcast %cst_10 : f32 to vector<16x128xf32>
      %c0_11 = arith.constant 0 : index
      %c0_12 = arith.constant 0 : index
      %14 = vector.load %arg11[%c0_11, %c0_12] : memref<16x128xf32, #tpu.memory_space<vmem>>, vector<16x128xf32>
      tpu.vector_store %arg11[%c0_11, %c0_12], %13 {strides = array<i32>} : memref<16x128xf32, #tpu.memory_space<vmem>>, vector<16x128xf32>,
    } else {
    }
    %c0 = arith.constant 0 : index
    %c0_1 = arith.constant 0 : index
    %3 = vector.load %arg2[%c0, %c0_1] : memref<16x128xf32, #tpu.memory_space<vmem>>, vector<16x128xf32>
    %4 = arith.truncf %3 : vector<16x128xf32> to vector<16x128xbf16>
    %c0_2 = arith.constant 0 : index
    %c0_3 = arith.constant 0 : index
    %5 = vector.load %arg11[%c0_2, %c0_3] : memref<16x128xf32, #tpu.memory_space<vmem>>, vector<16x128xf32>
    %c0_4 = arith.constant 0 : index
    %c0_5 = arith.constant 0 : index
    %6 = vector.load %arg3[%c0_4, %c0_5] : memref<128x128xbf16, #tpu.memory_space<vmem>>, vector<128x128xbf16>
    %cst = arith.constant dense<0.000000e+00> : vector<16x128xf32>
    %7 = tpu.matmul %4, %6, %cst {dimension_numbers = #tpu.dot_dimension_numbers<[1], [0], [0], [1], [0, 0, 1, 1], [], []>} : vector<16x128xbf16>, vector<128x128xbf16>, vector<16x128xf32> -> vector<16x128xf32>
    %8 = arith.addf %5, %7 : vector<16x128xf32>
    %c0_6 = arith.constant 0 : index
    %c0_7 = arith.constant 0 : index
    %9 = vector.load %arg11[%c0_6, %c0_7] : memref<16x128xf32, #tpu.memory_space<vmem>>, vector<16x128xf32>
    tpu.vector_store %arg11[%c0_6, %c0_7], %8 {strides = array<i32>} : memref<16x128xf32, #tpu.memory_space<vmem>>, vector<16x128xf32>,
    %c0_i32_8 = arith.constant 0 : i32
    %10 = arith.cmpi eq, %arg1, %c0_i32_8 : i32
    %11 = arith.extui %10 : i1 to i32
    %c0_i32_9 = arith.constant 0 : i32
    %12 = arith.cmpi ne, %11, %c0_i32_9 : i32
    scf.if %12 {
      %c0_10 = arith.constant 0 : index
      %c0_11 = arith.constant 0 : index
      %13 = vector.load %arg11[%c0_10, %c0_11] : memref<16x128xf32, #tpu.memory_space<vmem>>, vector<16x128xf32>
      %c0_12 = arith.constant 0 : index
      %c0_13 = arith.constant 0 : index
      %14 = vector.load %arg4[%c0_12, %c0_13] : memref<1x128xf32, #tpu.memory_space<vmem>>, vector<1x128xf32>
      %15 = vector.broadcast %14 : vector<1x128xf32> to vector<16x128xf32>
      %16 = arith.addf %13, %15 : vector<16x128xf32>
      %cst_14 = arith.constant 0.000000e+00 : f32
      %17 = vector.broadcast %cst_14 : f32 to vector<16x128xf32>
      %18 = arith.maximumf %16, %17 : vector<16x128xf32>
      %19 = arith.truncf %18 : vector<16x128xf32> to vector<16x128xbf16>
      %c0_15 = arith.constant 0 : index
      %c0_16 = arith.constant 0 : index
      %20 = vector.load %arg5[%c0_15, %c0_16] : memref<128x128xbf16, #tpu.memory_space<vmem>>, vector<128x128xbf16>
      %cst_17 = arith.constant dense<0.000000e+00> : vector<16x128xf32>
      %21 = tpu.matmul %19, %20, %cst_17 {dimension_numbers = #tpu.dot_dimension_numbers<[1], [0], [0], [1], [0, 0, 1, 1], [], []>} : vector<16x128xbf16>, vector<128x128xbf16>, vector<16x128xf32> -> vector<16x128xf32>
      %c0_18 = arith.constant 0 : index
      %c0_19 = arith.constant 0 : index
      %22 = vector.load %arg6[%c0_18, %c0_19] : memref<1x128xf32, #tpu.memory_space<vmem>>, vector<1x128xf32>
      %23 = vector.broadcast %22 : vector<1x128xf32> to vector<16x128xf32>
      %24 = arith.addf %21, %23 : vector<16x128xf32>
      %cst_20 = arith.constant 0.000000e+00 : f32
      %25 = vector.broadcast %cst_20 : f32 to vector<16x128xf32>
      %26 = arith.maximumf %24, %25 : vector<16x128xf32>
      %27 = arith.truncf %26 : vector<16x128xf32> to vector<16x128xbf16>
      %c0_21 = arith.constant 0 : index
      %c0_22 = arith.constant 0 : index
      %28 = vector.load %arg7[%c0_21, %c0_22] : memref<128x128xbf16, #tpu.memory_space<vmem>>, vector<128x128xbf16>
      %cst_23 = arith.constant dense<0.000000e+00> : vector<16x128xf32>
      %29 = tpu.matmul %27, %28, %cst_23 {dimension_numbers = #tpu.dot_dimension_numbers<[1], [0], [0], [1], [0, 0, 1, 1], [], []>} : vector<16x128xbf16>, vector<128x128xbf16>, vector<16x128xf32> -> vector<16x128xf32>
      %c0_24 = arith.constant 0 : index
      %c0_25 = arith.constant 0 : index
      %30 = vector.load %arg8[%c0_24, %c0_25] : memref<1x128xf32, #tpu.memory_space<vmem>>, vector<1x128xf32>
      %31 = vector.broadcast %30 : vector<1x128xf32> to vector<16x128xf32>
      %32 = arith.addf %29, %31 : vector<16x128xf32>
      %c0_26 = arith.constant 0 : index
      %c0_27 = arith.constant 0 : index
      %33 = vector.load %arg9[%c0_26, %c0_27] : memref<16x128xf32, #tpu.memory_space<vmem>>, vector<16x128xf32>
      tpu.vector_store %arg9[%c0_26, %c0_27], %32 {strides = array<i32>} : memref<16x128xf32, #tpu.memory_space<vmem>>, vector<16x128xf32>,
      %34 = arith.mulf %32, %32 : vector<16x128xf32>
      %cst_28 = arith.constant dense<0.000000e+00> : vector<16xf32>
      %35 = vector.multi_reduction <add>, %34, %cst_28 [1] : vector<16x128xf32> to vector<16xf32>
      %36 = vector.shape_cast %35 : vector<16xf32> to vector<16x1xf32>
      %37 = math.rsqrt %36 : vector<16x1xf32>
      %38 = vector.broadcast %37 : vector<16x1xf32> to vector<16x128xf32>
      %39 = arith.mulf %32, %38 : vector<16x128xf32>
      %c0_29 = arith.constant 0 : index
      %c0_30 = arith.constant 0 : index
      %40 = vector.load %arg10[%c0_29, %c0_30] : memref<16x128xf32, #tpu.memory_space<vmem>>, vector<16x128xf32>
      tpu.vector_store %arg10[%c0_29, %c0_30], %39 {strides = array<i32>} : memref<16x128xf32, #tpu.memory_space<vmem>>, vector<16x128xf32>,
    } else {
    }
    return
  }
  func.func @transform_0(%arg0: i32, %arg1: i32) -> (i32, i32) {
    %c0_i32 = arith.constant 0 : i32
    return %arg0, %arg1 : i32, i32
  }
  func.func @transform_1(%arg0: i32, %arg1: i32) -> (i32, i32) {
    %c0_i32 = arith.constant 0 : i32
    %c0_i32_0 = arith.constant 0 : i32
    %c0_i32_1 = arith.constant 0 : i32
    return %c0_i32, %c0_i32_0 : i32, i32
  }
  func.func @transform_2(%arg0: i32, %arg1: i32) -> (i32, i32) {
    %c0_i32 = arith.constant 0 : i32
    %c0_i32_0 = arith.constant 0 : i32
    %c0_i32_1 = arith.constant 0 : i32
    return %c0_i32, %c0_i32_0 : i32, i32
  }
  func.func @transform_3(%arg0: i32, %arg1: i32) -> (i32, i32) {
    %c0_i32 = arith.constant 0 : i32
    %c0_i32_0 = arith.constant 0 : i32
    %c0_i32_1 = arith.constant 0 : i32
    return %c0_i32, %c0_i32_0 : i32, i32
  }
  func.func @transform_4(%arg0: i32, %arg1: i32) -> (i32, i32) {
    %c0_i32 = arith.constant 0 : i32
    %c0_i32_0 = arith.constant 0 : i32
    %c0_i32_1 = arith.constant 0 : i32
    return %c0_i32, %c0_i32_0 : i32, i32
  }
  func.func @transform_5(%arg0: i32, %arg1: i32) -> (i32, i32) {
    %c0_i32 = arith.constant 0 : i32
    %c0_i32_0 = arith.constant 0 : i32
    %c0_i32_1 = arith.constant 0 : i32
    return %c0_i32, %c0_i32_0 : i32, i32
  }
  func.func @transform_6(%arg0: i32, %arg1: i32) -> (i32, i32) {
    %c0_i32 = arith.constant 0 : i32
    %c0_i32_0 = arith.constant 0 : i32
    %c0_i32_1 = arith.constant 0 : i32
    return %c0_i32, %c0_i32_0 : i32, i32
  }
  func.func @transform_7(%arg0: i32, %arg1: i32) -> (i32, i32) {
    %c0_i32 = arith.constant 0 : i32
    %c0_i32_0 = arith.constant 0 : i32
    return %arg0, %c0_i32 : i32, i32
  }
  func.func @transform_8(%arg0: i32, %arg1: i32) -> (i32, i32) {
    %c0_i32 = arith.constant 0 : i32
    %c0_i32_0 = arith.constant 0 : i32
    return %arg0, %c0_i32 : i32, i32
  }
}

</mosaic_0001>

<llo_original>
// kernel: image_net_forward.1
$region0: #{image_net_forward.1}
  #allocation0 [shape = 'u32[]', space=smem, size = 0x4, offset = 0x4, fixed_abs, tag = 'smem constant byte address 0x4 - core index']
  #allocation1 [shape = 'u32[144,128]{1,0:T(1,128)}', space=vmem, size = 0x12000, scoped, tag = 'internal scratch']
  #allocation2 [shape = 'f32[16,128]{1,0:T(8,128)}', space=vmem, size = 0x2000, scoped, tag = 'scratch operand']
  %s0 = inlined_call_operand.vmem [shape: f32[16,128], index: 0, kind: input, shape index: {}]
  %s1 = inlined_call_operand.vmem [shape: bf16[128,128], index: 1, kind: input, shape index: {}]
  %s2 = inlined_call_operand.vmem [shape: f32[1,128], index: 2, kind: input, shape index: {}]
  %s3 = inlined_call_operand.vmem [shape: bf16[128,128], index: 3, kind: input, shape index: {}]
  %s4 = inlined_call_operand.vmem [shape: f32[1,128], index: 4, kind: input, shape index: {}]
  %s5 = inlined_call_operand.vmem [shape: bf16[128,128], index: 5, kind: input, shape index: {}]
  %s6 = inlined_call_operand.vmem [shape: f32[1,128], index: 6, kind: input, shape index: {}]
  %s7 = inlined_call_operand.vmem [shape: f32[16,128], index: 7, kind: output, shape index: {0}]
  %s8 = inlined_call_operand.vmem [shape: f32[16,128], index: 8, kind: output, shape index: {1}]
  %9 = xla_tuple %s7, %s8
  %s10 = sld [smem:[#allocation0]]
  $region54: #{image_net_forward.1} parent=0
    _
  %s12 = ssub.s32 1, %s10
  %s13 = scalar_select 0, %s12, %s10
  // Predicated region
  $region2: #{image_net_forward.1} parent=0 // pred_check
    _
  $region3: #{image_net_forward.1} parent=0 // pred_check_branch
    %15 = sbr.rel (0) target = $region5
  $region4: #{image_net_forward.1} parent=0 // pred_region
    _
  $region5: #{image_net_forward.1} parent=0 // pred_fallthru
    _
  // Predicated region
  $region6: #{image_net_forward.1} parent=0 // pred_check
    _
  $region7: #{image_net_forward.1} parent=0 // pred_check_branch
    %17 = sbr.rel (0) target = $region9
  $region8: #{image_net_forward.1} parent=0 // pred_region
    _
  $region9: #{image_net_forward.1} parent=0 // pred_fallthru
    _
  // Predicated region
  $region10: #{image_net_forward.1} parent=0 // pred_check
    _
  $region11: #{image_net_forward.1} parent=0 // pred_check_branch
    %19 = sbr.rel (0) target = $region13
  $region12: #{image_net_forward.1} parent=0 // pred_region
    _
  $region13: #{image_net_forward.1} parent=0 // pred_fallthru
    _
  // Predicated region
  $region14: #{image_net_forward.1} parent=0 // pred_check
    _
  $region15: #{image_net_forward.1} parent=0 // pred_check_branch
    %21 = sbr.rel (0) target = $region17
  $region16: #{image_net_forward.1} parent=0 // pred_region
    _
  $region17: #{image_net_forward.1} parent=0 // pred_fallthru
    _
  // Predicated region
  $region18: #{image_net_forward.1} parent=0 // pred_check
    _
  $region19: #{image_net_forward.1} parent=0 // pred_check_branch
    %23 = sbr.rel (0) target = $region21
  $region20: #{image_net_forward.1} parent=0 // pred_region
    _
  $region21: #{image_net_forward.1} parent=0 // pred_fallthru
    _
  // Predicated region
  $region22: #{image_net_forward.1} parent=0 // pred_check
    _
  $region23: #{image_net_forward.1} parent=0 // pred_check_branch
    %25 = sbr.rel (0) target = $region25
  $region24: #{image_net_forward.1} parent=0 // pred_region
    _
  $region25: #{image_net_forward.1} parent=0 // pred_fallthru
    _
  // Predicated region
  $region26: #{image_net_forward.1} parent=0 // pred_check
    _
  $region27: #{image_net_forward.1} parent=0 // pred_check_branch
    %27 = sbr.rel (0) target = $region29
  $region28: #{image_net_forward.1} parent=0 // pred_region
    _
  $region29: #{image_net_forward.1} parent=0 // pred_fallthru
    _
  %p29 = scmp.eq.s32.totalorder 0, 0
  // Predicated region
  $region30: #{image_net_forward.1} parent=0 // pred_check
    %p30 = pneg %p29
  $region31: #{image_net_forward.1} parent=0 // pred_check_branch
    %32 = sbr.rel (%p30) target = $region33
  $region32: #{image_net_forward.1} parent=0 // pred_region
    %33 = vst [vmem:[#allocation2] sm:$0xff] 0.0
    %34 = vst [vmem:[#allocation2 + $0x8] sm:$0xff] 0.0
  $region33: #{image_net_forward.1} parent=0 // pred_fallthru
    _
  %v35 = vld [vmem:[%s0] sm:$0xff]
  %v36 = vld [vmem:[%s0 + $0x8] sm:$0xff]
  %v37 = vpack.c.bf16 %v36, %v35
  %v38 = vld [vmem:[#allocation2] sm:$0xff]
  %v39 = vld [vmem:[#allocation2 + $0x8] sm:$0xff]
  %v40 = vld [vmem:[%s1] sm:$0xf]
  %v41 = vld [vmem:[%s1 + $0x4] sm:$0xf]
  %v42 = vld [vmem:[%s1 + $0x8] sm:$0xf]
  %v43 = vld [vmem:[%s1 + $0xc] sm:$0xf]
  %v44 = vld [vmem:[%s1 + $0x10] sm:$0xf]
  %v45 = vld [vmem:[%s1 + $0x14] sm:$0xf]
  %v46 = vld [vmem:[%s1 + $0x18] sm:$0xf]
  %v47 = vld [vmem:[%s1 + $0x1c] sm:$0xf]
  %v48 = vld [vmem:[%s1 + $0x20] sm:$0xf]
  %v49 = vld [vmem:[%s1 + $0x24] sm:$0xf]
  %v50 = vld [vmem:[%s1 + $0x28] sm:$0xf]
  %v51 = vld [vmem:[%s1 + $0x2c] sm:$0xf]
  %v52 = vld [vmem:[%s1 + $0x30] sm:$0xf]
  %v53 = vld [vmem:[%s1 + $0x34] sm:$0xf]
  %v54 = vld [vmem:[%s1 + $0x38] sm:$0xf]
  %v55 = vld [vmem:[%s1 + $0x3c] sm:$0xf]
  %v72 = vunpack.c.l.b16 %v40
  %v73 = vunpack.c.l.b16 %v41
  %v74 = vunpack.c.l.b16 %v42
  %v75 = vunpack.c.l.b16 %v43
  %v76 = vunpack.c.l.b16 %v44
  %v77 = vunpack.c.l.b16 %v45
  %v78 = vunpack.c.l.b16 %v46
  %v79 = vunpack.c.l.b16 %v47
  %v80 = vunpack.c.l.b16 %v48
  %v81 = vunpack.c.l.b16 %v49
  %v82 = vunpack.c.l.b16 %v50
  %v83 = vunpack.c.l.b16 %v51
  %v84 = vunpack.c.l.b16 %v52
  %v85 = vunpack.c.l.b16 %v53
  %v86 = vunpack.c.l.b16 %v54
  %v87 = vunpack.c.l.b16 %v55
  %v88 = vpack.c.b16 %v73, %v72
  %v89 = vpack.c.b16 %v75, %v74
  %v90 = vpack.c.b16 %v77, %v76
  %v91 = vpack.c.b16 %v79, %v78
  %v92 = vpack.c.b16 %v81, %v80
  %v93 = vpack.c.b16 %v83, %v82
  %v94 = vpack.c.b16 %v85, %v84
  %v95 = vpack.c.b16 %v87, %v86
  %104 = vmatprep.subr.bf16.mxu0 0
  %105 = vmatpush1.bf16.msra.mxu0 %v88
  %106 = vmatprep.subr.bf16.mxu0 0
  %107 = vmatpush1.bf16.msra.mxu0 %v89
  %108 = vmatprep.subr.bf16.mxu0 0
  %109 = vmatpush1.bf16.msra.mxu0 %v90
  %110 = vmatprep.subr.bf16.mxu0 0
  %111 = vmatpush1.bf16.msra.mxu0 %v91
  %112 = vmatprep.subr.bf16.mxu0 0
  %113 = vmatpush1.bf16.msra.mxu0 %v92
  %114 = vmatprep.subr.bf16.mxu0 0
  %115 = vmatpush1.bf16.msra.mxu0 %v93
  %116 = vmatprep.subr.bf16.mxu0 0
  %117 = vmatpush1.bf16.msra.mxu0 %v94
  %118 = vmatprep.subr.bf16.mxu0 0
  %119 = vmatpush1.bf16.msra.mxu0 %v95
  %120 = vmatprep.subr.bf16.mxu0 0
  %121 = vmatpush1.bf16.msra.mxu0 0
  %122 = vmatprep.subr.bf16.mxu0 0
  %123 = vmatpush1.bf16.msra.mxu0 0
  %124 = vmatprep.subr.bf16.mxu0 0
  %125 = vmatpush1.bf16.msra.mxu0 0
  %126 = vmatprep.subr.bf16.mxu0 0
  %127 = vmatpush1.bf16.msra.mxu0 0
  %128 = vmatprep.subr.bf16.mxu0 0
  %129 = vmatpush1.bf16.msra.mxu0 0
  %130 = vmatprep.subr.bf16.mxu0 0
  %131 = vmatpush1.bf16.msra.mxu0 0
  %132 = vmatprep.subr.bf16.mxu0 0
  %133 = vmatpush1.bf16.msra.mxu0 0
  %134 = vmatprep.subr.bf16.mxu0 0
  %135 = vmatpush1.bf16.msra.mxu0 0
  %136 = vmatprep.mubr.bf16.mxu0 0
  %137 = vmatmul.mubr.bf16.gmra.mrb[0].mxu0 %v37
  %v138 = vpop.f32.mrb[0].mxu0
  %v139 = vadd.f32 0.0, %v138
  %v140 = vpop.f32.mrb[0].mxu0
  %v141 = vpop.f32.mrb[0].mxu0
  %v142 = vadd.f32 0.0, %v141
  %v143 = vpop.f32.mrb[0].mxu0
  %144 = vdwg.mxu0
  %v145 = vadd.f32 %v38, %v139
  %v146 = vadd.f32 %v39, %v142
  %147 = vst [vmem:[#allocation2] sm:$0xff] %v145
  %148 = vst [vmem:[#allocation2 + $0x8] sm:$0xff] %v146
  // Predicated region
  $region34: #{image_net_forward.1} parent=0 // pred_check
    %p149 = pneg %p29
  $region35: #{image_net_forward.1} parent=0 // pred_check_branch
    %151 = sbr.rel (%p149) target = $region37
  $region36: #{image_net_forward.1} parent=0 // pred_region
    %v152 = vld [vmem:[#allocation2] sm:$0xff]
    %v153 = vld [vmem:[#allocation2 + $0x8] sm:$0xff]
    %v154 = vld [vmem:[%s2] sm:$0x1]
    %v156 = vlaneseq
    %v157 = vshrl.u32 %v156, 7
    %v158 = vsub.s32 0, %v157
    %v159 = vrot.slane %v154, %v158
    %v161 = vadd.f32 %v152, %v159
    %v162 = vadd.f32 %v153, %v159
    %v163 = vmax.f32 %v161, 0.0
    %v164 = vmax.f32 %v162, 0.0
    %v165 = vpack.c.bf16 %v164, %v163
    %v166 = vld [vmem:[%s3] sm:$0xf]
    %v167 = vld [vmem:[%s3 + $0x4] sm:$0xf]
    %v168 = vld [vmem:[%s3 + $0x8] sm:$0xf]
    %v169 = vld [vmem:[%s3 + $0xc] sm:$0xf]
    %v170 = vld [vmem:[%s3 + $0x10] sm:$0xf]
    %v171 = vld [vmem:[%s3 + $0x14] sm:$0xf]
    %v172 = vld [vmem:[%s3 + $0x18] sm:$0xf]
    %v173 = vld [vmem:[%s3 + $0x1c] sm:$0xf]
    %v174 = vld [vmem:[%s3 + $0x20] sm:$0xf]
    %v175 = vld [vmem:[%s3 + $0x24] sm:$0xf]
    %v176 = vld [vmem:[%s3 + $0x28] sm:$0xf]
    %v177 = vld [vmem:[%s3 + $0x2c] sm:$0xf]
    %v178 = vld [vmem:[%s3 + $0x30] sm:$0xf]
    %v179 = vld [vmem:[%s3 + $0x34] sm:$0xf]
    %v180 = vld [vmem:[%s3 + $0x38] sm:$0xf]
    %v181 = vld [vmem:[%s3 + $0x3c] sm:$0xf]
    %v182 = vld [vmem:[%s4] sm:$0x1]
    %v184 = vlaneseq
    %v185 = vshrl.u32 %v184, 7
    %v186 = vsub.s32 0, %v185
    %v187 = vrot.slane %v182, %v186
    %v205 = vunpack.c.l.b16 %v166
    %v206 = vunpack.c.l.b16 %v167
    %v207 = vunpack.c.l.b16 %v168
    %v208 = vunpack.c.l.b16 %v169
    %v209 = vunpack.c.l.b16 %v170
    %v210 = vunpack.c.l.b16 %v171
    %v211 = vunpack.c.l.b16 %v172
    %v212 = vunpack.c.l.b16 %v173
    %v213 = vunpack.c.l.b16 %v174
    %v214 = vunpack.c.l.b16 %v175
    %v215 = vunpack.c.l.b16 %v176
    %v216 = vunpack.c.l.b16 %v177
    %v217 = vunpack.c.l.b16 %v178
    %v218 = vunpack.c.l.b16 %v179
    %v219 = vunpack.c.l.b16 %v180
    %v220 = vunpack.c.l.b16 %v181
    %v221 = vpack.c.b16 %v206, %v205
    %v222 = vpack.c.b16 %v208, %v207
    %v223 = vpack.c.b16 %v210, %v209
    %v224 = vpack.c.b16 %v212, %v211
    %v225 = vpack.c.b16 %v214, %v213
    %v226 = vpack.c.b16 %v216, %v215
    %v227 = vpack.c.b16 %v218, %v217
    %v228 = vpack.c.b16 %v220, %v219
    %237 = vmatprep.subr.bf16.mxu0 0
    %238 = vmatpush1.bf16.msra.mxu0 %v221
    %239 = vmatprep.subr.bf16.mxu0 0
    %240 = vmatpush1.bf16.msra.mxu0 %v222
    %241 = vmatprep.subr.bf16.mxu0 0
    %242 = vmatpush1.bf16.msra.mxu0 %v223
    %243 = vmatprep.subr.bf16.mxu0 0
    %244 = vmatpush1.bf16.msra.mxu0 %v224
    %245 = vmatprep.subr.bf16.mxu0 0
    %246 = vmatpush1.bf16.msra.mxu0 %v225
    %247 = vmatprep.subr.bf16.mxu0 0
    %248 = vmatpush1.bf16.msra.mxu0 %v226
    %249 = vmatprep.subr.bf16.mxu0 0
    %250 = vmatpush1.bf16.msra.mxu0 %v227
    %251 = vmatprep.subr.bf16.mxu0 0
    %252 = vmatpush1.bf16.msra.mxu0 %v228
    %253 = vmatprep.subr.bf16.mxu0 0
    %254 = vmatpush1.bf16.msra.mxu0 0
    %255 = vmatprep.subr.bf16.mxu0 0
    %256 = vmatpush1.bf16.msra.mxu0 0
    %257 = vmatprep.subr.bf16.mxu0 0
    %258 = vmatpush1.bf16.msra.mxu0 0
    %259 = vmatprep.subr.bf16.mxu0 0
    %260 = vmatpush1.bf16.msra.mxu0 0
    %261 = vmatprep.subr.bf16.mxu0 0
    %262 = vmatpush1.bf16.msra.mxu0 0
    %263 = vmatprep.subr.bf16.mxu0 0
    %264 = vmatpush1.bf16.msra.mxu0 0
    %265 = vmatprep.subr.bf16.mxu0 0
    %266 = vmatpush1.bf16.msra.mxu0 0
    %267 = vmatprep.subr.bf16.mxu0 0
    %268 = vmatpush1.bf16.msra.mxu0 0
    %269 = vmatprep.mubr.bf16.mxu0 0
    %270 = vmatmul.mubr.bf16.gmra.mrb[0].mxu0 %v165
    %v271 = vpop.f32.mrb[0].mxu0
    %v272 = vadd.f32 %v187, %v271
    %v273 = vpop.f32.mrb[0].mxu0
    %v274 = vpop.f32.mrb[0].mxu0
    %v275 = vadd.f32 %v187, %v274
    %v276 = vpop.f32.mrb[0].mxu0
    %277 = vdwg.mxu0
    %v278 = vmax.f32 %v272, 0.0
    %v279 = vmax.f32 %v275, 0.0
    %v280 = vpack.c.bf16 %v279, %v278
    %v281 = vld [vmem:[%s5] sm:$0xf]
    %v282 = vld [vmem:[%s5 + $0x4] sm:$0xf]
    %v283 = vld [vmem:[%s5 + $0x8] sm:$0xf]
    %v284 = vld [vmem:[%s5 + $0xc] sm:$0xf]
    %v285 = vld [vmem:[%s5 + $0x10] sm:$0xf]
    %v286 = vld [vmem:[%s5 + $0x14] sm:$0xf]
    %v287 = vld [vmem:[%s5 + $0x18] sm:$0xf]
    %v288 = vld [vmem:[%s5 + $0x1c] sm:$0xf]
    %v289 = vld [vmem:[%s5 + $0x20] sm:$0xf]
    %v290 = vld [vmem:[%s5 + $0x24] sm:$0xf]
    %v291 = vld [vmem:[%s5 + $0x28] sm:$0xf]
    %v292 = vld [vmem:[%s5 + $0x2c] sm:$0xf]
    %v293 = vld [vmem:[%s5 + $0x30] sm:$0xf]
    %v294 = vld [vmem:[%s5 + $0x34] sm:$0xf]
    %v295 = vld [vmem:[%s5 + $0x38] sm:$0xf]
    %v296 = vld [vmem:[%s5 + $0x3c] sm:$0xf]
    %v297 = vld [vmem:[%s6] sm:$0x1]
    %v299 = vlaneseq
    %v300 = vshrl.u32 %v299, 7
    %v301 = vsub.s32 0, %v300
    %v302 = vrot.slane %v297, %v301
    %v320 = vunpack.c.l.b16 %v281
    %v321 = vunpack.c.l.b16 %v282
    %v322 = vunpack.c.l.b16 %v283
    %v323 = vunpack.c.l.b16 %v284
    %v324 = vunpack.c.l.b16 %v285
    %v325 = vunpack.c.l.b16 %v286
    %v326 = vunpack.c.l.b16 %v287
    %v327 = vunpack.c.l.b16 %v288
    %v328 = vunpack.c.l.b16 %v289
    %v329 = vunpack.c.l.b16 %v290
    %v330 = vunpack.c.l.b16 %v291
    %v331 = vunpack.c.l.b16 %v292
    %v332 = vunpack.c.l.b16 %v293
    %v333 = vunpack.c.l.b16 %v294
    %v334 = vunpack.c.l.b16 %v295
    %v335 = vunpack.c.l.b16 %v296
    %v336 = vpack.c.b16 %v321, %v320
    %v337 = vpack.c.b16 %v323, %v322
    %v338 = vpack.c.b16 %v325, %v324
    %v339 = vpack.c.b16 %v327, %v326
    %v340 = vpack.c.b16 %v329, %v328
    %v341 = vpack.c.b16 %v331, %v330
    %v342 = vpack.c.b16 %v333, %v332
    %v343 = vpack.c.b16 %v335, %v334
    %352 = vmatprep.subr.bf16.mxu0 0
    %353 = vmatpush1.bf16.msra.mxu0 %v336
    %354 = vmatprep.subr.bf16.mxu0 0
    %355 = vmatpush1.bf16.msra.mxu0 %v337
    %356 = vmatprep.subr.bf16.mxu0 0
    %357 = vmatpush1.bf16.msra.mxu0 %v338
    %358 = vmatprep.subr.bf16.mxu0 0
    %359 = vmatpush1.bf16.msra.mxu0 %v339
    %360 = vmatprep.subr.bf16.mxu0 0
    %361 = vmatpush1.bf16.msra.mxu0 %v340
    %362 = vmatprep.subr.bf16.mxu0 0
    %363 = vmatpush1.bf16.msra.mxu0 %v341
    %364 = vmatprep.subr.bf16.mxu0 0
    %365 = vmatpush1.bf16.msra.mxu0 %v342
    %366 = vmatprep.subr.bf16.mxu0 0
    %367 = vmatpush1.bf16.msra.mxu0 %v343
    %368 = vmatprep.subr.bf16.mxu0 0
    %369 = vmatpush1.bf16.msra.mxu0 0
    %370 = vmatprep.subr.bf16.mxu0 0
    %371 = vmatpush1.bf16.msra.mxu0 0
    %372 = vmatprep.subr.bf16.mxu0 0
    %373 = vmatpush1.bf16.msra.mxu0 0
    %374 = vmatprep.subr.bf16.mxu0 0
    %375 = vmatpush1.bf16.msra.mxu0 0
    %376 = vmatprep.subr.bf16.mxu0 0
    %377 = vmatpush1.bf16.msra.mxu0 0
    %378 = vmatprep.subr.bf16.mxu0 0
    %379 = vmatpush1.bf16.msra.mxu0 0
    %380 = vmatprep.subr.bf16.mxu0 0
    %381 = vmatpush1.bf16.msra.mxu0 0
    %382 = vmatprep.subr.bf16.mxu0 0
    %383 = vmatpush1.bf16.msra.mxu0 0
    %384 = vmatprep.mubr.bf16.mxu0 0
    %385 = vmatmul.mubr.bf16.gmra.mrb[0].mxu0 %v280
    %v386 = vpop.f32.mrb[0].mxu0
    %v387 = vadd.f32 %v302, %v386
    %v388 = vpop.f32.mrb[0].mxu0
    %v389 = vpop.f32.mrb[0].mxu0
    %v390 = vadd.f32 %v302, %v389
    %v391 = vpop.f32.mrb[0].mxu0
    %392 = vdwg.mxu0
    %393 = vst [vmem:[%s7] sm:$0xff] %v387
    %394 = vst [vmem:[%s7 + $0x8] sm:$0xff] %v390
    %v395 = vmul.f32 %v387, %v387
    %v396 = vmul.f32 %v390, %v390
    %397 = vadd.xlane.f32.xlu0 %v395
    %v398 = vpop.xlane.xlu0 %397
    %399 = vadd.xlane.f32.xlu0 %v396
    %v400 = vpop.xlane.xlu0 %399
    %v401 = vrsqrt.pop %v398
    %v402 = vrsqrt.pop %v400
    %v403 = vmul.f32 %v387, %v401
    %v404 = vmul.f32 %v390, %v402
    %405 = vst [vmem:[%s8] sm:$0xff] %v403
    %406 = vst [vmem:[%s8 + $0x8] sm:$0xff] %v404
  $region37: #{image_net_forward.1} parent=0 // pred_fallthru
    _
  // Predicated region
  $region38: #{image_net_forward.1} parent=0 // pred_check
    _
  $region39: #{image_net_forward.1} parent=0 // pred_check_branch
    %408 = sbr.rel (0) target = $region41
  $region40: #{image_net_forward.1} parent=0 // pred_region
    _
  $region41: #{image_net_forward.1} parent=0 // pred_fallthru
    _
  // Predicated region
  $region42: #{image_net_forward.1} parent=0 // pred_check
    _
  $region43: #{image_net_forward.1} parent=0 // pred_check_branch
    %410 = sbr.rel (0) target = $region45
  $region44: #{image_net_forward.1} parent=0 // pred_region
    _
  $region45: #{image_net_forward.1} parent=0 // pred_fallthru
    _
  // Predicated region
  $region46: #{image_net_forward.1} parent=0 // pred_check
    _
  $region47: #{image_net_forward.1} parent=0 // pred_check_branch
    %412 = sbr.rel (0) target = $region49
  $region48: #{image_net_forward.1} parent=0 // pred_region
    _
  $region49: #{image_net_forward.1} parent=0 // pred_fallthru
    _
  // Predicated region
  $region50: #{image_net_forward.1} parent=0 // pred_check
    _
  $region51: #{image_net_forward.1} parent=0 // pred_check_branch
    %414 = sbr.rel (0) target = $region53
  $region52: #{image_net_forward.1} parent=0 // pred_region
    _
  $region53: #{image_net_forward.1} parent=0 // pred_fallthru
    _

</llo_original>
